<compile_context>
chip_gen: v7x
topology: tpu7x:2x2x1
jax: 0.10.0
libtpu: 0.0.40
codegen_flags: <defaults>
</compile_context>

<pallas_src>
import functools
import math

import jax
import jax.numpy as jnp
from jax.experimental import pallas as pl
from jax.experimental.pallas import tpu as pltpu


def _resblock_kernel(x_ref, w1_ref, b1_ref, w2_ref, b2_ref, o_ref, *, seq_len):
    # x_ref block: (rows, lanes) = gb whole length-`seq_len` sequences stacked
    # on the sublane axis, `pack` sequences * C channels packed on lanes.
    x = x_ref[...].astype(jnp.float32)                       # (M, lanes)
    M, _ = x.shape

    # In-sequence position per row as an (M, 1) column vector; all lane-packed
    # sequences in a row share the same position, so one column masks them all.
    pos = jax.lax.broadcasted_iota(jnp.int32, (M, 1), 0) % seq_len
    is_first = pos == 0
    is_last = pos == seq_len - 1

    def conv1d(h, w_ref, b_ref):
        # k=3, padding=1 conv == 3 shifted matmuls; shifts via XLU roll (free
        # slot) with a one-row boundary mask (no concat / unaligned slices).
        h_prev = jnp.where(is_first, 0.0, pltpu.roll(h, 1, 0))      # h[l-1]
        h_next = jnp.where(is_last, 0.0, pltpu.roll(h, M - 1, 0))   # h[l+1]
        # Bias folded into the accumulator init (one fewer live temporary).
        y = jnp.broadcast_to(b_ref[...].astype(jnp.float32), h.shape)
        y = y + jnp.dot(h, w_ref[1], preferred_element_type=jnp.float32)
        y = y + jnp.dot(h_prev, w_ref[0], preferred_element_type=jnp.float32)
        y = y + jnp.dot(h_next, w_ref[2], preferred_element_type=jnp.float32)
        return y

    h = jnp.maximum(x, 0.0)                                  # ReLU
    h = conv1d(h, w1_ref, b1_ref)                            # Conv1d #1
    h = jnp.maximum(h, 0.0)                                  # ReLU
    h = conv1d(h, w2_ref, b2_ref)                            # Conv1d #2
    # Residual in f32, single cast at the very end.
    o_ref[...] = (x + 0.3 * h).astype(o_ref.dtype)


def _block_diag_taps(w, pack):
    """(C_out, C_in, 3) PyTorch Conv1d weight -> (3, pack*C_in, pack*C_out)
    block-diagonal tap matrices (pack copies of each (C_in, C_out) tap)."""
    wk = jnp.transpose(w, (2, 1, 0))                 # (3, C_in, C_out)
    k, ci, co = wk.shape
    eye = jnp.eye(pack, dtype=wk.dtype)
    bd = jnp.einsum('pq,kij->kpiqj', eye, wk)        # (3, pack, ci, pack, co)
    return bd.reshape(k, pack * ci, pack * co)


def resblock_pallas(x_ncl, w1, b1, w2, b2, *, rows_per_block=4096):
    """x_ncl: (N, C, L) float32 (PyTorch NCL layout).
    w*: (C_out, C_in, 3), b*: (C,) -- PyTorch Conv1d parameter layout."""
    N, C, L = x_ncl.shape

    # ---- lane packing ----------------------------------------------------
    # Pack `pack` sequences side-by-side on the 128-wide lane axis so vregs,
    # stores and MXU passes are lane-dense (C=32 alone leaves 75% lanes dead).
    pack = max(1, 128 // C) if C <= 128 else 1
    lanes = pack * C
    G = pl.cdiv(N, pack)                     # sequence groups (pre grid pad)

    # ---- grid sizing -----------------------------------------------------
    # Whole sequence-groups per block (boundary masks stay block-local),
    # sized to ~MiB-class payloads to amortize per-step overhead.
    gb = max(1, min(G, rows_per_block // max(L, 1)))
    if G >= 2:
        gb = min(gb, pl.cdiv(G, 2))          # >= 2 grid steps (v7x: 2 TCs)
    if gb < G:
        # Multi-step grid: rows = gb*L must be a multiple of 8 (sublane tile).
        base = 8 // math.gcd(L, 8)
        gb = max(base, (gb // base) * base)
    grid_n = pl.cdiv(G, gb)
    Gpad = grid_n * gb
    Npad = Gpad * pack
    rows = gb * L

    # ---- layout: (N, C, L) -> (Gpad*L, pack*C), one fused transpose --------
    x_pad = jnp.pad(x_ncl, ((0, Npad - N), (0, 0), (0, 0)))
    x_rows = (x_pad.reshape(Gpad, pack, C, L)
              .transpose(0, 3, 1, 2)         # (Gpad, L, pack, C)
              .reshape(Gpad * L, lanes))

    w1_bd = _block_diag_taps(w1, pack)       # (3, lanes, lanes)
    w2_bd = _block_diag_taps(w2, pack)
    b1_r = jnp.tile(b1, pack).reshape(1, lanes)
    b2_r = jnp.tile(b2, pack).reshape(1, lanes)

    # VMEM budget: double-buffered in/out blocks plus ~6 live f32 temporaries
    # in the kernel plus both weight tensors; clamp to 64 MiB so tiles sized
    # on v5e/v6e stay legal on v7x.
    block_bytes = rows * lanes * 4
    vmem_limit = min(max(12 * block_bytes + 8 * 3 * lanes * lanes * 4
                         + (2 << 20), 16 << 20), 64 << 20)

    kernel = functools.partial(_resblock_kernel, seq_len=L)
    out_rows = pl.pallas_call(
        kernel,
        out_shape=jax.ShapeDtypeStruct((Gpad * L, lanes), x_rows.dtype),
        grid_spec=pltpu.PrefetchScalarGridSpec(
            num_scalar_prefetch=0,
            grid=(grid_n,),
            in_specs=[
                pl.BlockSpec((rows, lanes), lambda i: (i, 0)),
                pl.BlockSpec((3, lanes, lanes), lambda i: (0, 0, 0)),
                pl.BlockSpec((1, lanes), lambda i: (0, 0)),
                pl.BlockSpec((3, lanes, lanes), lambda i: (0, 0, 0)),
                pl.BlockSpec((1, lanes), lambda i: (0, 0)),
            ],
            out_specs=pl.BlockSpec((rows, lanes), lambda i: (i, 0)),
        ),
        compiler_params=pltpu.CompilerParams(
            dimension_semantics=("parallel",),
            vmem_limit_bytes=vmem_limit),
    )(x_rows, w1_bd, b1_r, w2_bd, b2_r)

    # ---- un-pack: (Gpad*L, pack*C) -> (N, C, L), one fused transpose -------
    out = (out_rows.reshape(Gpad, L, pack, C)
           .transpose(0, 2, 3, 1)            # (Gpad, pack, C, L)
           .reshape(Npad, C, L))[:N]
    return out


def _resblock_reference(x_ncl, w1, b1, w2, b2):
    """Pure-JAX reference mirroring the PyTorch forward."""
    N, C, L = x_ncl.shape
    x = jnp.transpose(x_ncl, (0, 2, 1))                      # (N, L, C)

    def conv1d(h, w, b):
        wk = jnp.transpose(w, (2, 1, 0))                     # (3, C_in, C_out)
        hp = jnp.pad(h, ((0, 0), (1, 1), (0, 0)))
        y = sum(jnp.einsum('nlc,cd->nld', hp[:, k:k + L], wk[k]) for k in range(3))
        return y + b[None, None, :]

    h = jax.nn.relu(x)
    h = conv1d(h, w1, b1)
    h = jax.nn.relu(h)
    h = conv1d(h, w2, b2)
    out = x + 0.3 * h
    return jnp.transpose(out, (0, 2, 1))


if __name__ == "__main__":
    # Small shapes consistent with the module: batch=2, hidden=32, seq=8
    N, C, L = 2, 32, 8
    key = jax.random.PRNGKey(0)
    kx, k1, k2, k3, k4 = jax.random.split(key, 5)

    x = jax.random.normal(kx, (N, C, L), dtype=jnp.float32)

    # Deterministic Conv1d-style init: uniform(-bound, bound), bound = 1/sqrt(fan_in)
    fan_in = C * 3
    bound = 1.0 / jnp.sqrt(jnp.float32(fan_in))
    w1 = jax.random.uniform(k1, (C, C, 3), jnp.float32, -bound, bound)
    b1 = jax.random.uniform(k2, (C,), jnp.float32, -bound, bound)
    w2 = jax.random.uniform(k3, (C, C, 3), jnp.float32, -bound, bound)
    b2 = jax.random.uniform(k4, (C,), jnp.float32, -bound, bound)

    out = jax.block_until_ready(resblock_pallas(x, w1, b1, w2, b2))
    ref = jax.block_until_ready(_resblock_reference(x, w1, b1, w2, b2))

    assert out.shape == (N, C, L)
    assert jnp.allclose(out, ref, atol=1e-5, rtol=1e-5), "mismatch vs reference"
    print("KERNEL_OK")
</pallas_src>

<mosaic_0001>
module attributes {stable_mosaic.version = 11 : i64} {
  func.func @_resblock_kernel(%arg0: i32, %arg1: memref<8x128xf32, #tpu.memory_space<vmem>>, %arg2: memref<3x128x128xf32, #tpu.memory_space<vmem>>, %arg3: memref<1x128xf32, #tpu.memory_space<vmem>>, %arg4: memref<3x128x128xf32, #tpu.memory_space<vmem>>, %arg5: memref<1x128xf32, #tpu.memory_space<vmem>>, %arg6: memref<8x128xf32, #tpu.memory_space<vmem>>) attributes {dimension_semantics = [#tpu.dimension_semantics<parallel>], iteration_bounds = array<i64: 1>, scalar_prefetch = 0 : i64, scratch_operands = 0 : i64, tpu.core_type = #tpu.core_type<tc>, window_params = [{transform_indices = @transform_0, window_bounds = array<i64: 8, 128>}, {pipeline_mode = #tpu.pipeline_mode<synchronous>, transform_indices = @transform_1, window_bounds = array<i64: 3, 128, 128>}, {pipeline_mode = #tpu.pipeline_mode<synchronous>, transform_indices = @transform_2, window_bounds = array<i64: 1, 128>}, {pipeline_mode = #tpu.pipeline_mode<synchronous>, transform_indices = @transform_3, window_bounds = array<i64: 3, 128, 128>}, {pipeline_mode = #tpu.pipeline_mode<synchronous>, transform_indices = @transform_4, window_bounds = array<i64: 1, 128>}, {transform_indices = @transform_5, window_bounds = array<i64: 8, 128>}]} {
    %c0 = arith.constant 0 : index
    %c0_0 = arith.constant 0 : index
    %0 = vector.load %arg1[%c0, %c0_0] : memref<8x128xf32, #tpu.memory_space<vmem>>, vector<8x128xf32>
    %1 = tpu.iota {dimensions = array<i32: 0>} : vector<8x1xi32>
    %c8_i32 = arith.constant 8 : i32
    %c0_i32 = arith.constant 0 : i32
    %2 = arith.cmpi eq, %c8_i32, %c0_i32 : i32
    %c1_i32 = arith.constant 1 : i32
    %3 = arith.select %2, %c1_i32, %c8_i32 : i32
    %4 = vector.broadcast %3 : i32 to vector<8x1xi32>
    %5 = arith.remsi %1, %4 : vector<8x1xi32>
    %c0_i32_1 = arith.constant 0 : i32
    %6 = vector.broadcast %c0_i32_1 : i32 to vector<8x1xi32>
    %7 = arith.cmpi ne, %5, %6 : vector<8x1xi32>
    %c0_i32_2 = arith.constant 0 : i32
    %8 = vector.broadcast %c0_i32_2 : i32 to vector<8x1xi32>
    %9 = arith.cmpi slt, %5, %8 : vector<8x1xi32>
    %c0_i32_3 = arith.constant 0 : i32
    %10 = arith.cmpi slt, %3, %c0_i32_3 : i32
    %11 = vector.broadcast %10 : i1 to vector<8x1xi1>
    %12 = vector.broadcast %11 : vector<8x1xi1> to vector<8x1xi1>
    %13 = arith.xori %9, %12 : vector<8x1xi1>
    %14 = arith.andi %13, %7 : vector<8x1xi1>
    %15 = vector.broadcast %3 : i32 to vector<8x1xi32>
    %16 = arith.addi %5, %15 : vector<8x1xi32>
    %17 = arith.select %14, %16, %5 : vector<8x1xi1>, vector<8x1xi32>
    %c0_i32_4 = arith.constant 0 : i32
    %18 = vector.broadcast %c0_i32_4 : i32 to vector<8x1xi32>
    %19 = arith.cmpi eq, %17, %18 : vector<8x1xi32>
    %c7_i32 = arith.constant 7 : i32
    %20 = vector.broadcast %c7_i32 : i32 to vector<8x1xi32>
    %21 = arith.cmpi eq, %17, %20 : vector<8x1xi32>
    %cst = arith.constant 0.000000e+00 : f32
    %22 = vector.broadcast %cst : f32 to vector<8x128xf32>
    %23 = arith.maximumf %0, %22 : vector<8x128xf32>
    %c1_i32_5 = arith.constant 1 : i32
    %24 = tpu.dynamic_rotate %23 by %c1_i32_5 dim 0 : vector<8x128xf32>, i32 -> vector<8x128xf32>
    %cst_6 = arith.constant 0.000000e+00 : f32
    %25 = vector.shape_cast %19 : vector<8x1xi1> to vector<8x1xi1>
    %26 = vector.broadcast %25 : vector<8x1xi1> to vector<8x128xi1>
    %27 = vector.broadcast %cst_6 : f32 to vector<8x128xf32>
    %28 = arith.select %26, %27, %24 : vector<8x128xi1>, vector<8x128xf32>
    %c7_i32_7 = arith.constant 7 : i32
    %29 = tpu.dynamic_rotate %23 by %c7_i32_7 dim 0 : vector<8x128xf32>, i32 -> vector<8x128xf32>
    %cst_8 = arith.constant 0.000000e+00 : f32
    %30 = vector.shape_cast %21 : vector<8x1xi1> to vector<8x1xi1>
    %31 = vector.broadcast %30 : vector<8x1xi1> to vector<8x128xi1>
    %32 = vector.broadcast %cst_8 : f32 to vector<8x128xf32>
    %33 = arith.select %31, %32, %29 : vector<8x128xi1>, vector<8x128xf32>
    %c0_9 = arith.constant 0 : index
    %c0_10 = arith.constant 0 : index
    %34 = vector.load %arg3[%c0_9, %c0_10] : memref<1x128xf32, #tpu.memory_space<vmem>>, vector<1x128xf32>
    %35 = vector.shape_cast %34 : vector<1x128xf32> to vector<1x128xf32>
    %36 = vector.broadcast %35 : vector<1x128xf32> to vector<8x128xf32>
    %c1 = arith.constant 1 : index
    %c0_11 = arith.constant 0 : index
    %c0_12 = arith.constant 0 : index
    %37 = vector.load %arg2[%c1, %c0_11, %c0_12] : memref<3x128x128xf32, #tpu.memory_space<vmem>>, vector<1x128x128xf32>
    %38 = vector.shape_cast %37 : vector<1x128x128xf32> to vector<128x128xf32>
    %cst_13 = arith.constant dense<0.000000e+00> : vector<8x128xf32>
    %39 = tpu.matmul %23, %38, %cst_13 {dimension_numbers = #tpu.dot_dimension_numbers<[1], [0], [0], [1], [0, 0, 1, 1], [], []>} : vector<8x128xf32>, vector<128x128xf32>, vector<8x128xf32> -> vector<8x128xf32>
    %40 = arith.addf %36, %39 : vector<8x128xf32>
    %c0_14 = arith.constant 0 : index
    %c0_15 = arith.constant 0 : index
    %c0_16 = arith.constant 0 : index
    %41 = vector.load %arg2[%c0_14, %c0_15, %c0_16] : memref<3x128x128xf32, #tpu.memory_space<vmem>>, vector<1x128x128xf32>
    %42 = vector.shape_cast %41 : vector<1x128x128xf32> to vector<128x128xf32>
    %cst_17 = arith.constant dense<0.000000e+00> : vector<8x128xf32>
    %43 = tpu.matmul %28, %42, %cst_17 {dimension_numbers = #tpu.dot_dimension_numbers<[1], [0], [0], [1], [0, 0, 1, 1], [], []>} : vector<8x128xf32>, vector<128x128xf32>, vector<8x128xf32> -> vector<8x128xf32>
    %44 = arith.addf %40, %43 : vector<8x128xf32>
    %c2 = arith.constant 2 : index
    %c0_18 = arith.constant 0 : index
    %c0_19 = arith.constant 0 : index
    %45 = vector.load %arg2[%c2, %c0_18, %c0_19] : memref<3x128x128xf32, #tpu.memory_space<vmem>>, vector<1x128x128xf32>
    %46 = vector.shape_cast %45 : vector<1x128x128xf32> to vector<128x128xf32>
    %cst_20 = arith.constant dense<0.000000e+00> : vector<8x128xf32>
    %47 = tpu.matmul %33, %46, %cst_20 {dimension_numbers = #tpu.dot_dimension_numbers<[1], [0], [0], [1], [0, 0, 1, 1], [], []>} : vector<8x128xf32>, vector<128x128xf32>, vector<8x128xf32> -> vector<8x128xf32>
    %48 = arith.addf %44, %47 : vector<8x128xf32>
    %cst_21 = arith.constant 0.000000e+00 : f32
    %49 = vector.broadcast %cst_21 : f32 to vector<8x128xf32>
    %50 = arith.maximumf %48, %49 : vector<8x128xf32>
    %c1_i32_22 = arith.constant 1 : i32
    %51 = tpu.dynamic_rotate %50 by %c1_i32_22 dim 0 : vector<8x128xf32>, i32 -> vector<8x128xf32>
    %cst_23 = arith.constant 0.000000e+00 : f32
    %52 = vector.shape_cast %19 : vector<8x1xi1> to vector<8x1xi1>
    %53 = vector.broadcast %52 : vector<8x1xi1> to vector<8x128xi1>
    %54 = vector.broadcast %cst_23 : f32 to vector<8x128xf32>
    %55 = arith.select %53, %54, %51 : vector<8x128xi1>, vector<8x128xf32>
    %c7_i32_24 = arith.constant 7 : i32
    %56 = tpu.dynamic_rotate %50 by %c7_i32_24 dim 0 : vector<8x128xf32>, i32 -> vector<8x128xf32>
    %cst_25 = arith.constant 0.000000e+00 : f32
    %57 = vector.shape_cast %21 : vector<8x1xi1> to vector<8x1xi1>
    %58 = vector.broadcast %57 : vector<8x1xi1> to vector<8x128xi1>
    %59 = vector.broadcast %cst_25 : f32 to vector<8x128xf32>
    %60 = arith.select %58, %59, %56 : vector<8x128xi1>, vector<8x128xf32>
    %c0_26 = arith.constant 0 : index
    %c0_27 = arith.constant 0 : index
    %61 = vector.load %arg5[%c0_26, %c0_27] : memref<1x128xf32, #tpu.memory_space<vmem>>, vector<1x128xf32>
    %62 = vector.shape_cast %61 : vector<1x128xf32> to vector<1x128xf32>
    %63 = vector.broadcast %62 : vector<1x128xf32> to vector<8x128xf32>
    %c1_28 = arith.constant 1 : index
    %c0_29 = arith.constant 0 : index
    %c0_30 = arith.constant 0 : index
    %64 = vector.load %arg4[%c1_28, %c0_29, %c0_30] : memref<3x128x128xf32, #tpu.memory_space<vmem>>, vector<1x128x128xf32>
    %65 = vector.shape_cast %64 : vector<1x128x128xf32> to vector<128x128xf32>
    %cst_31 = arith.constant dense<0.000000e+00> : vector<8x128xf32>
    %66 = tpu.matmul %50, %65, %cst_31 {dimension_numbers = #tpu.dot_dimension_numbers<[1], [0], [0], [1], [0, 0, 1, 1], [], []>} : vector<8x128xf32>, vector<128x128xf32>, vector<8x128xf32> -> vector<8x128xf32>
    %67 = arith.addf %63, %66 : vector<8x128xf32>
    %c0_32 = arith.constant 0 : index
    %c0_33 = arith.constant 0 : index
    %c0_34 = arith.constant 0 : index
    %68 = vector.load %arg4[%c0_32, %c0_33, %c0_34] : memref<3x128x128xf32, #tpu.memory_space<vmem>>, vector<1x128x128xf32>
    %69 = vector.shape_cast %68 : vector<1x128x128xf32> to vector<128x128xf32>
    %cst_35 = arith.constant dense<0.000000e+00> : vector<8x128xf32>
    %70 = tpu.matmul %55, %69, %cst_35 {dimension_numbers = #tpu.dot_dimension_numbers<[1], [0], [0], [1], [0, 0, 1, 1], [], []>} : vector<8x128xf32>, vector<128x128xf32>, vector<8x128xf32> -> vector<8x128xf32>
    %71 = arith.addf %67, %70 : vector<8x128xf32>
    %c2_36 = arith.constant 2 : index
    %c0_37 = arith.constant 0 : index
    %c0_38 = arith.constant 0 : index
    %72 = vector.load %arg4[%c2_36, %c0_37, %c0_38] : memref<3x128x128xf32, #tpu.memory_space<vmem>>, vector<1x128x128xf32>
    %73 = vector.shape_cast %72 : vector<1x128x128xf32> to vector<128x128xf32>
    %cst_39 = arith.constant dense<0.000000e+00> : vector<8x128xf32>
    %74 = tpu.matmul %60, %73, %cst_39 {dimension_numbers = #tpu.dot_dimension_numbers<[1], [0], [0], [1], [0, 0, 1, 1], [], []>} : vector<8x128xf32>, vector<128x128xf32>, vector<8x128xf32> -> vector<8x128xf32>
    %75 = arith.addf %71, %74 : vector<8x128xf32>
    %cst_40 = arith.constant 3.000000e-01 : f32
    %76 = vector.broadcast %cst_40 : f32 to vector<8x128xf32>
    %77 = arith.mulf %76, %75 : vector<8x128xf32>
    %78 = arith.addf %0, %77 : vector<8x128xf32>
    %c0_41 = arith.constant 0 : index
    %c0_42 = arith.constant 0 : index
    %79 = vector.load %arg6[%c0_41, %c0_42] : memref<8x128xf32, #tpu.memory_space<vmem>>, vector<8x128xf32>
    tpu.vector_store %arg6[%c0_41, %c0_42], %78 {strides = array<i32>} : memref<8x128xf32, #tpu.memory_space<vmem>>, vector<8x128xf32>,
    return
  }
  func.func @transform_0(%arg0: i32) -> (i32, i32) {
    %c0_i32 = arith.constant 0 : i32
    %c0_i32_0 = arith.constant 0 : i32
    return %arg0, %c0_i32 : i32, i32
  }
  func.func @transform_1(%arg0: i32) -> (i32, i32, i32) {
    %c0_i32 = arith.constant 0 : i32
    %c0_i32_0 = arith.constant 0 : i32
    %c0_i32_1 = arith.constant 0 : i32
    %c0_i32_2 = arith.constant 0 : i32
    return %c0_i32, %c0_i32_0, %c0_i32_1 : i32, i32, i32
  }
  func.func @transform_2(%arg0: i32) -> (i32, i32) {
    %c0_i32 = arith.constant 0 : i32
    %c0_i32_0 = arith.constant 0 : i32
    %c0_i32_1 = arith.constant 0 : i32
    return %c0_i32, %c0_i32_0 : i32, i32
  }
  func.func @transform_3(%arg0: i32) -> (i32, i32, i32) {
    %c0_i32 = arith.constant 0 : i32
    %c0_i32_0 = arith.constant 0 : i32
    %c0_i32_1 = arith.constant 0 : i32
    %c0_i32_2 = arith.constant 0 : i32
    return %c0_i32, %c0_i32_0, %c0_i32_1 : i32, i32, i32
  }
  func.func @transform_4(%arg0: i32) -> (i32, i32) {
    %c0_i32 = arith.constant 0 : i32
    %c0_i32_0 = arith.constant 0 : i32
    %c0_i32_1 = arith.constant 0 : i32
    return %c0_i32, %c0_i32_0 : i32, i32
  }
  func.func @transform_5(%arg0: i32) -> (i32, i32) {
    %c0_i32 = arith.constant 0 : i32
    %c0_i32_0 = arith.constant 0 : i32
    return %arg0, %c0_i32 : i32, i32
  }
}

</mosaic_0001>

<llo_original>
// kernel: tpu_custom_call.1
$region0: #{tpu_custom_call.1}
  #allocation0 [shape = 'u32[]', space=smem, size = 0x4, offset = 0x4, fixed_abs, tag = 'smem constant byte address 0x4 - core index']
  #allocation1 [shape = 'u32[144,128]{1,0:T(1,128)}', space=vmem, size = 0x12000, scoped, tag = 'internal scratch']
  %s0 = inlined_call_operand.hbm [shape: f32[8,128], index: 0, kind: input, shape index: {}]
  %s1 = inlined_call_operand.hbm [shape: f32[3,128,128], index: 1, kind: input, shape index: {}]
  %s2 = inlined_call_operand.vmem [shape: f32[1,128], index: 2, kind: input, shape index: {}]
  %s3 = inlined_call_operand.hbm [shape: f32[3,128,128], index: 3, kind: input, shape index: {}]
  %s4 = inlined_call_operand.vmem [shape: f32[1,128], index: 4, kind: input, shape index: {}]
  %s5 = inlined_call_operand.hbm [shape: f32[8,128], index: 5, kind: output, shape index: {}]
  %s6 = sld [smem:[#allocation0]]
  $region42: #{tpu_custom_call.1} parent=0
    _
  %s8 = ssub.s32 1, %s6
  %s9 = scalar_select 0, %s8, %s6
  $region1: #{tpu_custom_call.1} parent=0
    #allocation2 [shape = 'u8[4096]{0}', space=vmem, size = 0x1000, scoped, tag = 'input window, operand 0, single buffered']
    #allocation3 [shape = 's32[1]{0}', space=sflag, size = 0x4, scoped, tag = 'scoped memory for tpu_custom_call.1']
    #allocation4 [shape = 's32[1]{0}', space=sflag, size = 0x4, scoped, tag = 'scoped memory for tpu_custom_call.1']
    #allocation5 [shape = 'u8[196608]{0}', space=vmem, size = 0x30000, scoped, tag = 'input window, operand 1, single buffered']
    #allocation6 [shape = 's32[1]{0}', space=sflag, size = 0x4, scoped, tag = 'scoped memory for tpu_custom_call.1']
    #allocation7 [shape = 'u8[196608]{0}', space=vmem, size = 0x30000, scoped, tag = 'input window, operand 3, single buffered']
    #allocation8 [shape = 'u8[4096]{0}', space=vmem, size = 0x1000, scoped, tag = 'output window, operand 0, single buffered']
    %10 = vsyncpa [#allocation3], 0
    %11 = vsyncpa [#allocation6], 0
    %12 = vsyncpa [#allocation4], 0
    // Predicated region
    $region2: #{tpu_custom_call.1} parent=1 // pred_check
      _
    $region3: #{tpu_custom_call.1} parent=1 // pred_check_branch
      %14 = sbr.rel (0) target = $region5
    $region4: #{tpu_custom_call.1} parent=1 // pred_region
      %s16 = ssub.s32 128, 128
      %17 = vsyncadd [#allocation3], %s16
      %s19 = sshll.u32 [#allocation2], 4
      %s20 = int_to_ptr.vmem [resolvable:$true] %s19
      %22 = dma.hbm_to_vmem [thread:$0]  %s0, 128, %s20, [#allocation3]
    $region5: #{tpu_custom_call.1} parent=1 // pred_fallthru
      _
    // Predicated region
    $region6: #{tpu_custom_call.1} parent=1 // pred_check
      _
    $region7: #{tpu_custom_call.1} parent=1 // pred_check_branch
      %24 = sbr.rel (0) target = $region9
    $region8: #{tpu_custom_call.1} parent=1 // pred_region
      %s26 = ssub.s32 6144, 6144
      %27 = vsyncadd [#allocation6], %s26
      %s28 = sshll.u32 [#allocation5], 4
      %s29 = int_to_ptr.vmem [resolvable:$true] %s28
      %34 = dma.hbm_to_vmem [thread:$0]  %s1, 6144, %s29, [#allocation6], 128, 128, 8
    $region9: #{tpu_custom_call.1} parent=1 // pred_fallthru
      _
    // Predicated region
    $region10: #{tpu_custom_call.1} parent=1 // pred_check
      _
    $region11: #{tpu_custom_call.1} parent=1 // pred_check_branch
      %36 = sbr.rel (0) target = $region13
    $region12: #{tpu_custom_call.1} parent=1 // pred_region
      _
    $region13: #{tpu_custom_call.1} parent=1 // pred_fallthru
      _
    // Predicated region
    $region14: #{tpu_custom_call.1} parent=1 // pred_check
      _
    $region15: #{tpu_custom_call.1} parent=1 // pred_check_branch
      %38 = sbr.rel (0) target = $region17
    $region16: #{tpu_custom_call.1} parent=1 // pred_region
      %s40 = ssub.s32 6144, 6144
      %41 = vsyncadd [#allocation6], %s40
      %s42 = sshll.u32 [#allocation7], 4
      %s43 = int_to_ptr.vmem [resolvable:$true] %s42
      %48 = dma.hbm_to_vmem [thread:$0]  %s3, 6144, %s43, [#allocation6], 128, 128, 8
    $region17: #{tpu_custom_call.1} parent=1 // pred_fallthru
      _
    // Predicated region
    $region18: #{tpu_custom_call.1} parent=1 // pred_check
      _
    $region19: #{tpu_custom_call.1} parent=1 // pred_check_branch
      %50 = sbr.rel (0) target = $region21
    $region20: #{tpu_custom_call.1} parent=1 // pred_region
      _
    $region21: #{tpu_custom_call.1} parent=1 // pred_fallthru
      _
    // Predicated region
    $region22: #{tpu_custom_call.1} parent=1 // pred_check
      _
    $region23: #{tpu_custom_call.1} parent=1 // pred_check_branch
      %52 = sbr.rel (0) target = $region25
    $region24: #{tpu_custom_call.1} parent=1 // pred_region
      %53 = dma.done [#allocation3], 128
    $region25: #{tpu_custom_call.1} parent=1 // pred_fallthru
      _
    // Predicated region
    $region26: #{tpu_custom_call.1} parent=1 // pred_check
      _
    $region27: #{tpu_custom_call.1} parent=1 // pred_check_branch
      %55 = sbr.rel (0) target = $region29
    $region28: #{tpu_custom_call.1} parent=1 // pred_region
      %56 = dma.done [#allocation6], 6144
    $region29: #{tpu_custom_call.1} parent=1 // pred_fallthru
      _
    // Predicated region
    $region30: #{tpu_custom_call.1} parent=1 // pred_check
      _
    $region31: #{tpu_custom_call.1} parent=1 // pred_check_branch
      %58 = sbr.rel (0) target = $region33
    $region32: #{tpu_custom_call.1} parent=1 // pred_region
      %59 = dma.done [#allocation6], 6144
    $region33: #{tpu_custom_call.1} parent=1 // pred_fallthru
      _
    %v60 = vld [vmem:[#allocation2] sm:$0xff]
    %v61 = vlaneseq
    %v62 = vshrl.u32 %v61, 7
    %vm63 = vcmp.lt.s32.totalorder %v62, 0
    %v64 = vsub.s32 0, %v62
    %v65 = vsel %vm63, %v64, %v62
    %v66 = vshrl.u32 %v65, 3
    %v67 = vand.u32 %v65, 7
    %v68 = vsub.s32 0, %v67
    %v69 = vsel %vm63, %v68, %v67
    %vm70 = vcmp.ne.s32.totalorder %v69, 0
    %vm71 = vcmp.lt.s32.totalorder %v69, 0
    %vm72 = vmand %vm71, %vm70
    %v73 = vadd.s32 %v69, 8
    %v74 = vsel %vm72, %v73, %v69
    %vm75 = vcmp.eq.s32.totalorder %v74, 0
    %vm76 = vcmp.eq.s32.totalorder %v74, 7
    %v77 = vmax.f32 %v60, 0.0
    %v78 = vrot.slane %v77, 7
    %v79 = vsel %vm75, 1, 0
    %vm80 = vcmp.eq.s32.totalorder %v79, 1
    %v81 = vsel %vm80, 0.0, %v78
    %v82 = vrot.slane %v77, 1
    %v83 = vsel %vm76, 1, 0
    %vm84 = vcmp.eq.s32.totalorder %v83, 1
    %v85 = vsel %vm84, 0.0, %v82
    %v86 = vld [vmem:[%s2] sm:$0x1]
    %v88 = vlaneseq
    %v89 = vshrl.u32 %v88, 7
    %v90 = vsub.s32 0, %v89
    %v91 = vrot.slane %v86, %v90
    %s93 = scalar_lea.vmem [#allocation5], 128
    %v94 = vld [vmem:[%s93] sm:$0xff]
    %v95 = vld [vmem:[%s93 + $0x8] sm:$0xff]
    %v96 = vld [vmem:[%s93 + $0x10] sm:$0xff]
    %v97 = vld [vmem:[%s93 + $0x18] sm:$0xff]
    %v98 = vld [vmem:[%s93 + $0x20] sm:$0xff]
    %v99 = vld [vmem:[%s93 + $0x28] sm:$0xff]
    %v100 = vld [vmem:[%s93 + $0x30] sm:$0xff]
    %v101 = vld [vmem:[%s93 + $0x38] sm:$0xff]
    %v102 = vld [vmem:[%s93 + $0x40] sm:$0xff]
    %v103 = vld [vmem:[%s93 + $0x48] sm:$0xff]
    %v104 = vld [vmem:[%s93 + $0x50] sm:$0xff]
    %v105 = vld [vmem:[%s93 + $0x58] sm:$0xff]
    %v106 = vld [vmem:[%s93 + $0x60] sm:$0xff]
    %v107 = vld [vmem:[%s93 + $0x68] sm:$0xff]
    %v108 = vld [vmem:[%s93 + $0x70] sm:$0xff]
    %v109 = vld [vmem:[%s93 + $0x78] sm:$0xff]
    %110 = vmatprep.subr.mxu0 0.0
    %111 = vmatpush1.msra.mxu0 %v94
    %112 = vmatprep.subr.mxu0 0.0
    %113 = vmatpush1.msra.mxu0 %v95
    %114 = vmatprep.subr.mxu0 0.0
    %115 = vmatpush1.msra.mxu0 %v96
    %116 = vmatprep.subr.mxu0 0.0
    %117 = vmatpush1.msra.mxu0 %v97
    %118 = vmatprep.subr.mxu0 0.0
    %119 = vmatpush1.msra.mxu0 %v98
    %120 = vmatprep.subr.mxu0 0.0
    %121 = vmatpush1.msra.mxu0 %v99
    %122 = vmatprep.subr.mxu0 0.0
    %123 = vmatpush1.msra.mxu0 %v100
    %124 = vmatprep.subr.mxu0 0.0
    %125 = vmatpush1.msra.mxu0 %v101
    %126 = vmatprep.subr.mxu0 0.0
    %127 = vmatpush1.msra.mxu0 %v102
    %128 = vmatprep.subr.mxu0 0.0
    %129 = vmatpush1.msra.mxu0 %v103
    %130 = vmatprep.subr.mxu0 0.0
    %131 = vmatpush1.msra.mxu0 %v104
    %132 = vmatprep.subr.mxu0 0.0
    %133 = vmatpush1.msra.mxu0 %v105
    %134 = vmatprep.subr.mxu0 0.0
    %135 = vmatpush1.msra.mxu0 %v106
    %136 = vmatprep.subr.mxu0 0.0
    %137 = vmatpush1.msra.mxu0 %v107
    %138 = vmatprep.subr.mxu0 0.0
    %139 = vmatpush1.msra.mxu0 %v108
    %140 = vmatprep.subr.mxu0 0.0
    %141 = vmatpush1.msra.mxu0 %v109
    %142 = vmatprep.subr.mxu0 0.0
    %143 = vmatpush1.msra.mxu0 0.0
    %144 = vmatprep.subr.mxu0 0.0
    %145 = vmatpush1.msra.mxu0 0.0
    %146 = vmatprep.subr.mxu0 0.0
    %147 = vmatpush1.msra.mxu0 0.0
    %148 = vmatprep.subr.mxu0 0.0
    %149 = vmatpush1.msra.mxu0 0.0
    %150 = vmatprep.subr.mxu0 0.0
    %151 = vmatpush1.msra.mxu0 0.0
    %152 = vmatprep.subr.mxu0 0.0
    %153 = vmatpush1.msra.mxu0 0.0
    %154 = vmatprep.subr.mxu0 0.0
    %155 = vmatpush1.msra.mxu0 0.0
    %156 = vmatprep.subr.mxu0 0.0
    %157 = vmatpush1.msra.mxu0 0.0
    %158 = vmatprep.subr.mxu0 0.0
    %159 = vmatpush1.msra.mxu0 0.0
    %160 = vmatprep.subr.mxu0 0.0
    %161 = vmatpush1.msra.mxu0 0.0
    %162 = vmatprep.subr.mxu0 0.0
    %163 = vmatpush1.msra.mxu0 0.0
    %164 = vmatprep.subr.mxu0 0.0
    %165 = vmatpush1.msra.mxu0 0.0
    %166 = vmatprep.subr.mxu0 0.0
    %167 = vmatpush1.msra.mxu0 0.0
    %168 = vmatprep.subr.mxu0 0.0
    %169 = vmatpush1.msra.mxu0 0.0
    %170 = vmatprep.subr.mxu0 0.0
    %171 = vmatpush1.msra.mxu0 0.0
    %172 = vmatprep.subr.mxu0 0.0
    %173 = vmatpush1.msra.mxu0 0.0
    %174 = vmatprep.mubr.f32.mxu0 0.0
    %175 = vmatmul.mubr.f32.gmra.mrb[0].mxu0 %v77
    %v176 = vpop.f32.mrb[0].mxu0
    %v177 = vadd.f32 0.0, %v176
    %v178 = vpop.f32.mrb[0].mxu0
    %179 = vdwg.mxu0
    %v180 = vadd.f32 %v91, %v177
    %v181 = vld [vmem:[#allocation5] sm:$0xff]
    %v182 = vld [vmem:[#allocation5 + $0x8] sm:$0xff]
    %v183 = vld [vmem:[#allocation5 + $0x10] sm:$0xff]
    %v184 = vld [vmem:[#allocation5 + $0x18] sm:$0xff]
    %v185 = vld [vmem:[#allocation5 + $0x20] sm:$0xff]
    %v186 = vld [vmem:[#allocation5 + $0x28] sm:$0xff]
    %v187 = vld [vmem:[#allocation5 + $0x30] sm:$0xff]
    %v188 = vld [vmem:[#allocation5 + $0x38] sm:$0xff]
    %v189 = vld [vmem:[#allocation5 + $0x40] sm:$0xff]
    %v190 = vld [vmem:[#allocation5 + $0x48] sm:$0xff]
    %v191 = vld [vmem:[#allocation5 + $0x50] sm:$0xff]
    %v192 = vld [vmem:[#allocation5 + $0x58] sm:$0xff]
    %v193 = vld [vmem:[#allocation5 + $0x60] sm:$0xff]
    %v194 = vld [vmem:[#allocation5 + $0x68] sm:$0xff]
    %v195 = vld [vmem:[#allocation5 + $0x70] sm:$0xff]
    %v196 = vld [vmem:[#allocation5 + $0x78] sm:$0xff]
    %197 = vmatprep.subr.mxu0 0.0
    %198 = vmatpush1.msra.mxu0 %v181
    %199 = vmatprep.subr.mxu0 0.0
    %200 = vmatpush1.msra.mxu0 %v182
    %201 = vmatprep.subr.mxu0 0.0
    %202 = vmatpush1.msra.mxu0 %v183
    %203 = vmatprep.subr.mxu0 0.0
    %204 = vmatpush1.msra.mxu0 %v184
    %205 = vmatprep.subr.mxu0 0.0
    %206 = vmatpush1.msra.mxu0 %v185
    %207 = vmatprep.subr.mxu0 0.0
    %208 = vmatpush1.msra.mxu0 %v186
    %209 = vmatprep.subr.mxu0 0.0
    %210 = vmatpush1.msra.mxu0 %v187
    %211 = vmatprep.subr.mxu0 0.0
    %212 = vmatpush1.msra.mxu0 %v188
    %213 = vmatprep.subr.mxu0 0.0
    %214 = vmatpush1.msra.mxu0 %v189
    %215 = vmatprep.subr.mxu0 0.0
    %216 = vmatpush1.msra.mxu0 %v190
    %217 = vmatprep.subr.mxu0 0.0
    %218 = vmatpush1.msra.mxu0 %v191
    %219 = vmatprep.subr.mxu0 0.0
    %220 = vmatpush1.msra.mxu0 %v192
    %221 = vmatprep.subr.mxu0 0.0
    %222 = vmatpush1.msra.mxu0 %v193
    %223 = vmatprep.subr.mxu0 0.0
    %224 = vmatpush1.msra.mxu0 %v194
    %225 = vmatprep.subr.mxu0 0.0
    %226 = vmatpush1.msra.mxu0 %v195
    %227 = vmatprep.subr.mxu0 0.0
    %228 = vmatpush1.msra.mxu0 %v196
    %229 = vmatprep.subr.mxu0 0.0
    %230 = vmatpush1.msra.mxu0 0.0
    %231 = vmatprep.subr.mxu0 0.0
    %232 = vmatpush1.msra.mxu0 0.0
    %233 = vmatprep.subr.mxu0 0.0
    %234 = vmatpush1.msra.mxu0 0.0
    %235 = vmatprep.subr.mxu0 0.0
    %236 = vmatpush1.msra.mxu0 0.0
    %237 = vmatprep.subr.mxu0 0.0
    %238 = vmatpush1.msra.mxu0 0.0
    %239 = vmatprep.subr.mxu0 0.0
    %240 = vmatpush1.msra.mxu0 0.0
    %241 = vmatprep.subr.mxu0 0.0
    %242 = vmatpush1.msra.mxu0 0.0
    %243 = vmatprep.subr.mxu0 0.0
    %244 = vmatpush1.msra.mxu0 0.0
    %245 = vmatprep.subr.mxu0 0.0
    %246 = vmatpush1.msra.mxu0 0.0
    %247 = vmatprep.subr.mxu0 0.0
    %248 = vmatpush1.msra.mxu0 0.0
    %249 = vmatprep.subr.mxu0 0.0
    %250 = vmatpush1.msra.mxu0 0.0
    %251 = vmatprep.subr.mxu0 0.0
    %252 = vmatpush1.msra.mxu0 0.0
    %253 = vmatprep.subr.mxu0 0.0
    %254 = vmatpush1.msra.mxu0 0.0
    %255 = vmatprep.subr.mxu0 0.0
    %256 = vmatpush1.msra.mxu0 0.0
    %257 = vmatprep.subr.mxu0 0.0
    %258 = vmatpush1.msra.mxu0 0.0
    %259 = vmatprep.subr.mxu0 0.0
    %260 = vmatpush1.msra.mxu0 0.0
    %261 = vmatprep.mubr.f32.mxu0 0.0
    %262 = vmatmul.mubr.f32.gmra.mrb[0].mxu0 %v81
    %v263 = vpop.f32.mrb[0].mxu0
    %v264 = vadd.f32 0.0, %v263
    %v265 = vpop.f32.mrb[0].mxu0
    %266 = vdwg.mxu0
    %v267 = vadd.f32 %v180, %v264
    %s268 = scalar_lea.vmem [#allocation5], 256
    %v269 = vld [vmem:[%s268] sm:$0xff]
    %v270 = vld [vmem:[%s268 + $0x8] sm:$0xff]
    %v271 = vld [vmem:[%s268 + $0x10] sm:$0xff]
    %v272 = vld [vmem:[%s268 + $0x18] sm:$0xff]
    %v273 = vld [vmem:[%s268 + $0x20] sm:$0xff]
    %v274 = vld [vmem:[%s268 + $0x28] sm:$0xff]
    %v275 = vld [vmem:[%s268 + $0x30] sm:$0xff]
    %v276 = vld [vmem:[%s268 + $0x38] sm:$0xff]
    %v277 = vld [vmem:[%s268 + $0x40] sm:$0xff]
    %v278 = vld [vmem:[%s268 + $0x48] sm:$0xff]
    %v279 = vld [vmem:[%s268 + $0x50] sm:$0xff]
    %v280 = vld [vmem:[%s268 + $0x58] sm:$0xff]
    %v281 = vld [vmem:[%s268 + $0x60] sm:$0xff]
    %v282 = vld [vmem:[%s268 + $0x68] sm:$0xff]
    %v283 = vld [vmem:[%s268 + $0x70] sm:$0xff]
    %v284 = vld [vmem:[%s268 + $0x78] sm:$0xff]
    %285 = vmatprep.subr.mxu0 0.0
    %286 = vmatpush1.msra.mxu0 %v269
    %287 = vmatprep.subr.mxu0 0.0
    %288 = vmatpush1.msra.mxu0 %v270
    %289 = vmatprep.subr.mxu0 0.0
    %290 = vmatpush1.msra.mxu0 %v271
    %291 = vmatprep.subr.mxu0 0.0
    %292 = vmatpush1.msra.mxu0 %v272
    %293 = vmatprep.subr.mxu0 0.0
    %294 = vmatpush1.msra.mxu0 %v273
    %295 = vmatprep.subr.mxu0 0.0
    %296 = vmatpush1.msra.mxu0 %v274
    %297 = vmatprep.subr.mxu0 0.0
    %298 = vmatpush1.msra.mxu0 %v275
    %299 = vmatprep.subr.mxu0 0.0
    %300 = vmatpush1.msra.mxu0 %v276
    %301 = vmatprep.subr.mxu0 0.0
    %302 = vmatpush1.msra.mxu0 %v277
    %303 = vmatprep.subr.mxu0 0.0
    %304 = vmatpush1.msra.mxu0 %v278
    %305 = vmatprep.subr.mxu0 0.0
    %306 = vmatpush1.msra.mxu0 %v279
    %307 = vmatprep.subr.mxu0 0.0
    %308 = vmatpush1.msra.mxu0 %v280
    %309 = vmatprep.subr.mxu0 0.0
    %310 = vmatpush1.msra.mxu0 %v281
    %311 = vmatprep.subr.mxu0 0.0
    %312 = vmatpush1.msra.mxu0 %v282
    %313 = vmatprep.subr.mxu0 0.0
    %314 = vmatpush1.msra.mxu0 %v283
    %315 = vmatprep.subr.mxu0 0.0
    %316 = vmatpush1.msra.mxu0 %v284
    %317 = vmatprep.subr.mxu0 0.0
    %318 = vmatpush1.msra.mxu0 0.0
    %319 = vmatprep.subr.mxu0 0.0
    %320 = vmatpush1.msra.mxu0 0.0
    %321 = vmatprep.subr.mxu0 0.0
    %322 = vmatpush1.msra.mxu0 0.0
    %323 = vmatprep.subr.mxu0 0.0
    %324 = vmatpush1.msra.mxu0 0.0
    %325 = vmatprep.subr.mxu0 0.0
    %326 = vmatpush1.msra.mxu0 0.0
    %327 = vmatprep.subr.mxu0 0.0
    %328 = vmatpush1.msra.mxu0 0.0
    %329 = vmatprep.subr.mxu0 0.0
    %330 = vmatpush1.msra.mxu0 0.0
    %331 = vmatprep.subr.mxu0 0.0
    %332 = vmatpush1.msra.mxu0 0.0
    %333 = vmatprep.subr.mxu0 0.0
    %334 = vmatpush1.msra.mxu0 0.0
    %335 = vmatprep.subr.mxu0 0.0
    %336 = vmatpush1.msra.mxu0 0.0
    %337 = vmatprep.subr.mxu0 0.0
    %338 = vmatpush1.msra.mxu0 0.0
    %339 = vmatprep.subr.mxu0 0.0
    %340 = vmatpush1.msra.mxu0 0.0
    %341 = vmatprep.subr.mxu0 0.0
    %342 = vmatpush1.msra.mxu0 0.0
    %343 = vmatprep.subr.mxu0 0.0
    %344 = vmatpush1.msra.mxu0 0.0
    %345 = vmatprep.subr.mxu0 0.0
    %346 = vmatpush1.msra.mxu0 0.0
    %347 = vmatprep.subr.mxu0 0.0
    %348 = vmatpush1.msra.mxu0 0.0
    %349 = vmatprep.mubr.f32.mxu0 0.0
    %350 = vmatmul.mubr.f32.gmra.mrb[0].mxu0 %v85
    %v351 = vpop.f32.mrb[0].mxu0
    %v352 = vadd.f32 0.0, %v351
    %v353 = vpop.f32.mrb[0].mxu0
    %354 = vdwg.mxu0
    %v355 = vadd.f32 %v267, %v352
    %v356 = vmax.f32 %v355, 0.0
    %v357 = vrot.slane %v356, 7
    %v358 = vsel %vm80, 0.0, %v357
    %v359 = vrot.slane %v356, 1
    %v360 = vsel %vm84, 0.0, %v359
    %v361 = vld [vmem:[%s4] sm:$0x1]
    %v363 = vlaneseq
    %v364 = vshrl.u32 %v363, 7
    %v365 = vsub.s32 0, %v364
    %v366 = vrot.slane %v361, %v365
    %s368 = scalar_lea.vmem [#allocation7], 128
    %v369 = vld [vmem:[%s368] sm:$0xff]
    %v370 = vld [vmem:[%s368 + $0x8] sm:$0xff]
    %v371 = vld [vmem:[%s368 + $0x10] sm:$0xff]
    %v372 = vld [vmem:[%s368 + $0x18] sm:$0xff]
    %v373 = vld [vmem:[%s368 + $0x20] sm:$0xff]
    %v374 = vld [vmem:[%s368 + $0x28] sm:$0xff]
    %v375 = vld [vmem:[%s368 + $0x30] sm:$0xff]
    %v376 = vld [vmem:[%s368 + $0x38] sm:$0xff]
    %v377 = vld [vmem:[%s368 + $0x40] sm:$0xff]
    %v378 = vld [vmem:[%s368 + $0x48] sm:$0xff]
    %v379 = vld [vmem:[%s368 + $0x50] sm:$0xff]
    %v380 = vld [vmem:[%s368 + $0x58] sm:$0xff]
    %v381 = vld [vmem:[%s368 + $0x60] sm:$0xff]
    %v382 = vld [vmem:[%s368 + $0x68] sm:$0xff]
    %v383 = vld [vmem:[%s368 + $0x70] sm:$0xff]
    %v384 = vld [vmem:[%s368 + $0x78] sm:$0xff]
    %385 = vmatprep.subr.mxu0 0.0
    %386 = vmatpush1.msra.mxu0 %v369
    %387 = vmatprep.subr.mxu0 0.0
    %388 = vmatpush1.msra.mxu0 %v370
    %389 = vmatprep.subr.mxu0 0.0
    %390 = vmatpush1.msra.mxu0 %v371
    %391 = vmatprep.subr.mxu0 0.0
    %392 = vmatpush1.msra.mxu0 %v372
    %393 = vmatprep.subr.mxu0 0.0
    %394 = vmatpush1.msra.mxu0 %v373
    %395 = vmatprep.subr.mxu0 0.0
    %396 = vmatpush1.msra.mxu0 %v374
    %397 = vmatprep.subr.mxu0 0.0
    %398 = vmatpush1.msra.mxu0 %v375
    %399 = vmatprep.subr.mxu0 0.0
    %400 = vmatpush1.msra.mxu0 %v376
    %401 = vmatprep.subr.mxu0 0.0
    %402 = vmatpush1.msra.mxu0 %v377
    %403 = vmatprep.subr.mxu0 0.0
    %404 = vmatpush1.msra.mxu0 %v378
    %405 = vmatprep.subr.mxu0 0.0
    %406 = vmatpush1.msra.mxu0 %v379
    %407 = vmatprep.subr.mxu0 0.0
    %408 = vmatpush1.msra.mxu0 %v380
    %409 = vmatprep.subr.mxu0 0.0
    %410 = vmatpush1.msra.mxu0 %v381
    %411 = vmatprep.subr.mxu0 0.0
    %412 = vmatpush1.msra.mxu0 %v382
    %413 = vmatprep.subr.mxu0 0.0
    %414 = vmatpush1.msra.mxu0 %v383
    %415 = vmatprep.subr.mxu0 0.0
    %416 = vmatpush1.msra.mxu0 %v384
    %417 = vmatprep.subr.mxu0 0.0
    %418 = vmatpush1.msra.mxu0 0.0
    %419 = vmatprep.subr.mxu0 0.0
    %420 = vmatpush1.msra.mxu0 0.0
    %421 = vmatprep.subr.mxu0 0.0
    %422 = vmatpush1.msra.mxu0 0.0
    %423 = vmatprep.subr.mxu0 0.0
    %424 = vmatpush1.msra.mxu0 0.0
    %425 = vmatprep.subr.mxu0 0.0
    %426 = vmatpush1.msra.mxu0 0.0
    %427 = vmatprep.subr.mxu0 0.0
    %428 = vmatpush1.msra.mxu0 0.0
    %429 = vmatprep.subr.mxu0 0.0
    %430 = vmatpush1.msra.mxu0 0.0
    %431 = vmatprep.subr.mxu0 0.0
    %432 = vmatpush1.msra.mxu0 0.0
    %433 = vmatprep.subr.mxu0 0.0
    %434 = vmatpush1.msra.mxu0 0.0
    %435 = vmatprep.subr.mxu0 0.0
    %436 = vmatpush1.msra.mxu0 0.0
    %437 = vmatprep.subr.mxu0 0.0
    %438 = vmatpush1.msra.mxu0 0.0
    %439 = vmatprep.subr.mxu0 0.0
    %440 = vmatpush1.msra.mxu0 0.0
    %441 = vmatprep.subr.mxu0 0.0
    %442 = vmatpush1.msra.mxu0 0.0
    %443 = vmatprep.subr.mxu0 0.0
    %444 = vmatpush1.msra.mxu0 0.0
    %445 = vmatprep.subr.mxu0 0.0
    %446 = vmatpush1.msra.mxu0 0.0
    %447 = vmatprep.subr.mxu0 0.0
    %448 = vmatpush1.msra.mxu0 0.0
    %449 = vmatprep.mubr.f32.mxu0 0.0
    %450 = vmatmul.mubr.f32.gmra.mrb[0].mxu0 %v356
    %v451 = vpop.f32.mrb[0].mxu0
    %v452 = vadd.f32 0.0, %v451
    %v453 = vpop.f32.mrb[0].mxu0
    %454 = vdwg.mxu0
    %v455 = vadd.f32 %v366, %v452
    %v456 = vld [vmem:[#allocation7] sm:$0xff]
    %v457 = vld [vmem:[#allocation7 + $0x8] sm:$0xff]
    %v458 = vld [vmem:[#allocation7 + $0x10] sm:$0xff]
    %v459 = vld [vmem:[#allocation7 + $0x18] sm:$0xff]
    %v460 = vld [vmem:[#allocation7 + $0x20] sm:$0xff]
    %v461 = vld [vmem:[#allocation7 + $0x28] sm:$0xff]
    %v462 = vld [vmem:[#allocation7 + $0x30] sm:$0xff]
    %v463 = vld [vmem:[#allocation7 + $0x38] sm:$0xff]
    %v464 = vld [vmem:[#allocation7 + $0x40] sm:$0xff]
    %v465 = vld [vmem:[#allocation7 + $0x48] sm:$0xff]
    %v466 = vld [vmem:[#allocation7 + $0x50] sm:$0xff]
    %v467 = vld [vmem:[#allocation7 + $0x58] sm:$0xff]
    %v468 = vld [vmem:[#allocation7 + $0x60] sm:$0xff]
    %v469 = vld [vmem:[#allocation7 + $0x68] sm:$0xff]
    %v470 = vld [vmem:[#allocation7 + $0x70] sm:$0xff]
    %v471 = vld [vmem:[#allocation7 + $0x78] sm:$0xff]
    %472 = vmatprep.subr.mxu0 0.0
    %473 = vmatpush1.msra.mxu0 %v456
    %474 = vmatprep.subr.mxu0 0.0
    %475 = vmatpush1.msra.mxu0 %v457
    %476 = vmatprep.subr.mxu0 0.0
    %477 = vmatpush1.msra.mxu0 %v458
    %478 = vmatprep.subr.mxu0 0.0
    %479 = vmatpush1.msra.mxu0 %v459
    %480 = vmatprep.subr.mxu0 0.0
    %481 = vmatpush1.msra.mxu0 %v460
    %482 = vmatprep.subr.mxu0 0.0
    %483 = vmatpush1.msra.mxu0 %v461
    %484 = vmatprep.subr.mxu0 0.0
    %485 = vmatpush1.msra.mxu0 %v462
    %486 = vmatprep.subr.mxu0 0.0
    %487 = vmatpush1.msra.mxu0 %v463
    %488 = vmatprep.subr.mxu0 0.0
    %489 = vmatpush1.msra.mxu0 %v464
    %490 = vmatprep.subr.mxu0 0.0
    %491 = vmatpush1.msra.mxu0 %v465
    %492 = vmatprep.subr.mxu0 0.0
    %493 = vmatpush1.msra.mxu0 %v466
    %494 = vmatprep.subr.mxu0 0.0
    %495 = vmatpush1.msra.mxu0 %v467
    %496 = vmatprep.subr.mxu0 0.0
    %497 = vmatpush1.msra.mxu0 %v468
    %498 = vmatprep.subr.mxu0 0.0
    %499 = vmatpush1.msra.mxu0 %v469
    %500 = vmatprep.subr.mxu0 0.0
    %501 = vmatpush1.msra.mxu0 %v470
    %502 = vmatprep.subr.mxu0 0.0
    %503 = vmatpush1.msra.mxu0 %v471
    %504 = vmatprep.subr.mxu0 0.0
    %505 = vmatpush1.msra.mxu0 0.0
    %506 = vmatprep.subr.mxu0 0.0
    %507 = vmatpush1.msra.mxu0 0.0
    %508 = vmatprep.subr.mxu0 0.0
    %509 = vmatpush1.msra.mxu0 0.0
    %510 = vmatprep.subr.mxu0 0.0
    %511 = vmatpush1.msra.mxu0 0.0
    %512 = vmatprep.subr.mxu0 0.0
    %513 = vmatpush1.msra.mxu0 0.0
    %514 = vmatprep.subr.mxu0 0.0
    %515 = vmatpush1.msra.mxu0 0.0
    %516 = vmatprep.subr.mxu0 0.0
    %517 = vmatpush1.msra.mxu0 0.0
    %518 = vmatprep.subr.mxu0 0.0
    %519 = vmatpush1.msra.mxu0 0.0
    %520 = vmatprep.subr.mxu0 0.0
    %521 = vmatpush1.msra.mxu0 0.0
    %522 = vmatprep.subr.mxu0 0.0
    %523 = vmatpush1.msra.mxu0 0.0
    %524 = vmatprep.subr.mxu0 0.0
    %525 = vmatpush1.msra.mxu0 0.0
    %526 = vmatprep.subr.mxu0 0.0
    %527 = vmatpush1.msra.mxu0 0.0
    %528 = vmatprep.subr.mxu0 0.0
    %529 = vmatpush1.msra.mxu0 0.0
    %530 = vmatprep.subr.mxu0 0.0
    %531 = vmatpush1.msra.mxu0 0.0
    %532 = vmatprep.subr.mxu0 0.0
    %533 = vmatpush1.msra.mxu0 0.0
    %534 = vmatprep.subr.mxu0 0.0
    %535 = vmatpush1.msra.mxu0 0.0
    %536 = vmatprep.mubr.f32.mxu0 0.0
    %537 = vmatmul.mubr.f32.gmra.mrb[0].mxu0 %v358
    %v538 = vpop.f32.mrb[0].mxu0
    %v539 = vadd.f32 0.0, %v538
    %v540 = vpop.f32.mrb[0].mxu0
    %541 = vdwg.mxu0
    %v542 = vadd.f32 %v455, %v539
    %s543 = scalar_lea.vmem [#allocation7], 256
    %v544 = vld [vmem:[%s543] sm:$0xff]
    %v545 = vld [vmem:[%s543 + $0x8] sm:$0xff]
    %v546 = vld [vmem:[%s543 + $0x10] sm:$0xff]
    %v547 = vld [vmem:[%s543 + $0x18] sm:$0xff]
    %v548 = vld [vmem:[%s543 + $0x20] sm:$0xff]
    %v549 = vld [vmem:[%s543 + $0x28] sm:$0xff]
    %v550 = vld [vmem:[%s543 + $0x30] sm:$0xff]
    %v551 = vld [vmem:[%s543 + $0x38] sm:$0xff]
    %v552 = vld [vmem:[%s543 + $0x40] sm:$0xff]
    %v553 = vld [vmem:[%s543 + $0x48] sm:$0xff]
    %v554 = vld [vmem:[%s543 + $0x50] sm:$0xff]
    %v555 = vld [vmem:[%s543 + $0x58] sm:$0xff]
    %v556 = vld [vmem:[%s543 + $0x60] sm:$0xff]
    %v557 = vld [vmem:[%s543 + $0x68] sm:$0xff]
    %v558 = vld [vmem:[%s543 + $0x70] sm:$0xff]
    %v559 = vld [vmem:[%s543 + $0x78] sm:$0xff]
    %560 = vmatprep.subr.mxu0 0.0
    %561 = vmatpush1.msra.mxu0 %v544
    %562 = vmatprep.subr.mxu0 0.0
    %563 = vmatpush1.msra.mxu0 %v545
    %564 = vmatprep.subr.mxu0 0.0
    %565 = vmatpush1.msra.mxu0 %v546
    %566 = vmatprep.subr.mxu0 0.0
    %567 = vmatpush1.msra.mxu0 %v547
    %568 = vmatprep.subr.mxu0 0.0
    %569 = vmatpush1.msra.mxu0 %v548
    %570 = vmatprep.subr.mxu0 0.0
    %571 = vmatpush1.msra.mxu0 %v549
    %572 = vmatprep.subr.mxu0 0.0
    %573 = vmatpush1.msra.mxu0 %v550
    %574 = vmatprep.subr.mxu0 0.0
    %575 = vmatpush1.msra.mxu0 %v551
    %576 = vmatprep.subr.mxu0 0.0
    %577 = vmatpush1.msra.mxu0 %v552
    %578 = vmatprep.subr.mxu0 0.0
    %579 = vmatpush1.msra.mxu0 %v553
    %580 = vmatprep.subr.mxu0 0.0
    %581 = vmatpush1.msra.mxu0 %v554
    %582 = vmatprep.subr.mxu0 0.0
    %583 = vmatpush1.msra.mxu0 %v555
    %584 = vmatprep.subr.mxu0 0.0
    %585 = vmatpush1.msra.mxu0 %v556
    %586 = vmatprep.subr.mxu0 0.0
    %587 = vmatpush1.msra.mxu0 %v557
    %588 = vmatprep.subr.mxu0 0.0
    %589 = vmatpush1.msra.mxu0 %v558
    %590 = vmatprep.subr.mxu0 0.0
    %591 = vmatpush1.msra.mxu0 %v559
    %592 = vmatprep.subr.mxu0 0.0
    %593 = vmatpush1.msra.mxu0 0.0
    %594 = vmatprep.subr.mxu0 0.0
    %595 = vmatpush1.msra.mxu0 0.0
    %596 = vmatprep.subr.mxu0 0.0
    %597 = vmatpush1.msra.mxu0 0.0
    %598 = vmatprep.subr.mxu0 0.0
    %599 = vmatpush1.msra.mxu0 0.0
    %600 = vmatprep.subr.mxu0 0.0
    %601 = vmatpush1.msra.mxu0 0.0
    %602 = vmatprep.subr.mxu0 0.0
    %603 = vmatpush1.msra.mxu0 0.0
    %604 = vmatprep.subr.mxu0 0.0
    %605 = vmatpush1.msra.mxu0 0.0
    %606 = vmatprep.subr.mxu0 0.0
    %607 = vmatpush1.msra.mxu0 0.0
    %608 = vmatprep.subr.mxu0 0.0
    %609 = vmatpush1.msra.mxu0 0.0
    %610 = vmatprep.subr.mxu0 0.0
    %611 = vmatpush1.msra.mxu0 0.0
    %612 = vmatprep.subr.mxu0 0.0
    %613 = vmatpush1.msra.mxu0 0.0
    %614 = vmatprep.subr.mxu0 0.0
    %615 = vmatpush1.msra.mxu0 0.0
    %616 = vmatprep.subr.mxu0 0.0
    %617 = vmatpush1.msra.mxu0 0.0
    %618 = vmatprep.subr.mxu0 0.0
    %619 = vmatpush1.msra.mxu0 0.0
    %620 = vmatprep.subr.mxu0 0.0
    %621 = vmatpush1.msra.mxu0 0.0
    %622 = vmatprep.subr.mxu0 0.0
    %623 = vmatpush1.msra.mxu0 0.0
    %624 = vmatprep.mubr.f32.mxu0 0.0
    %625 = vmatmul.mubr.f32.gmra.mrb[0].mxu0 %v360
    %v626 = vpop.f32.mrb[0].mxu0
    %v627 = vadd.f32 0.0, %v626
    %v628 = vpop.f32.mrb[0].mxu0
    %629 = vdwg.mxu0
    %v630 = vadd.f32 %v542, %v627
    %v631 = vmul.f32 %v630, 0.3
    %v632 = vadd.f32 %v60, %v631
    %633 = vst [vmem:[#allocation8] sm:$0xff] %v632
    // Predicated region
    $region34: #{tpu_custom_call.1} parent=1 // pred_check
      _
    $region35: #{tpu_custom_call.1} parent=1 // pred_check_branch
      %635 = sbr.rel (0) target = $region37
    $region36: #{tpu_custom_call.1} parent=1 // pred_region
      %s637 = ssub.s32 128, 128
      %638 = vsyncadd [#allocation4], %s637
      %s640 = sshll.u32 [#allocation8], 4
      %s641 = int_to_ptr.vmem [resolvable:$true] %s640
      %643 = dma.vmem_to_hbm [thread:$0]  %s641, 128, %s5, [#allocation4]
    $region37: #{tpu_custom_call.1} parent=1 // pred_fallthru
      _
    // Predicated region
    $region38: #{tpu_custom_call.1} parent=1 // pred_check
      _
    $region39: #{tpu_custom_call.1} parent=1 // pred_check_branch
      %645 = sbr.rel (0) target = $region41
    $region40: #{tpu_custom_call.1} parent=1 // pred_region
      %646 = dma.done [#allocation4], 128
    $region41: #{tpu_custom_call.1} parent=1 // pred_fallthru
      _
    %647 = vsyncpa [#allocation3], 1
    %648 = vsyncpa [#allocation6], 1
    %649 = vsyncpa [#allocation4], 1

</llo_original>
